<compile_context>
chip_gen: v7x
topology: tpu7x:2x2x1
jax: 0.10.0
libtpu: 0.0.40
codegen_flags: <defaults>
</compile_context>

<pallas_src>
import jax
import jax.numpy as jnp
from jax.experimental import pallas as pl
from jax.experimental.pallas import tpu as pltpu

EMBEDDING_DIM = 32   # Utils.embedding_dim
GMF_OUT = 32
MLP_H1 = 64
MLP_OUT = 32
FUSED = MLP_H1 + GMF_OUT      # 96: width of the fused first-layer output [h1 | gmf]
XCAT = 3 * EMBEDDING_DIM      # 96: width of the fused first-layer input  [u | m | u*m]


def _neumf_kernel(
    u_ref, m_ref,              # (TB, E)  user / movie latent tiles
    wf_ref, bf_ref,            # (3E, 96) fused [MLP-1 | GMF] weight, (1, 96) fused bias
    w2f_ref, b2_ref,           # (96, 32) zero-padded MLP-2 weight,   (1, 32) bias
    hwg_ref, hwm_ref, hb_ref,  # (1, 96), (1, 32), (1, 1) NeuMF head as row vectors
    out_ref,                   # (TB, 1)
    x_scratch,                 # (TB, 96) VMEM: fused input [u | m | u*m]
):
    E = u_ref.shape[-1]
    u = u_ref[...]
    m = m_ref[...]

    # Assemble X = [u | m | u*m] with static lane-offset stores into VMEM scratch.
    # (the elementwise product is kept in f32 so VPU math stays f32 on v5e)
    x_scratch[:, 0:E] = u
    x_scratch[:, E:2 * E] = m
    um = u.astype(jnp.float32) * m.astype(jnp.float32)
    x_scratch[:, 2 * E:3 * E] = um.astype(x_scratch.dtype)

    # Fused first layer: [h1 | gmf] = relu(X @ Wf + bf)  -- one K=96 MXU matmul.
    y = jnp.dot(x_scratch[...], wf_ref[...], preferred_element_type=jnp.float32)
    y = jnp.maximum(y + bf_ref[...], 0.0)                       # (TB, 96) f32

    # MLP second layer: h2 = relu(Y @ W2f + b2); the GMF columns of Y hit the
    # zero rows of W2f, so no slicing is required.
    h2 = jnp.dot(y.astype(w2f_ref.dtype), w2f_ref[...],
                 preferred_element_type=jnp.float32)
    h2 = jnp.maximum(h2 + b2_ref[...], 0.0)                     # (TB, 32) f32

    # NeuMF head (Linear 64 -> 1) on the VPU/XLU instead of an N=1 matmul:
    #   out = sum(Y * [0 | w_gmf]) + sum(h2 * w_mlp) + b
    out = (jnp.sum(y * hwg_ref[...], axis=-1, keepdims=True)
           + jnp.sum(h2 * hwm_ref[...], axis=-1, keepdims=True)
           + hb_ref[...])
    out_ref[...] = out.astype(out_ref.dtype)


def _round_up(x, m):
    return ((x + m - 1) // m) * m


def _prep_weights(params, compute_dtype):
    """Build the fused / zero-padded weight blocks once, outside the kernel."""
    E = EMBEDDING_DIM
    f32 = jnp.float32

    wf = jnp.zeros((3 * E, FUSED), f32)
    wf = wf.at[:2 * E, :MLP_H1].set(params["mlp_w1"].astype(f32))   # [u|m] -> h1
    wf = wf.at[2 * E:, MLP_H1:].set(params["gmf_w"].astype(f32))    # u*m  -> gmf
    bf = jnp.concatenate([params["mlp_b1"], params["gmf_b"]]).astype(f32).reshape(1, FUSED)

    w2f = jnp.zeros((FUSED, MLP_OUT), f32).at[:MLP_H1].set(params["mlp_w2"].astype(f32))
    b2 = params["mlp_b2"].astype(f32).reshape(1, MLP_OUT)

    nw = params["neumf_w"].astype(f32)                              # (64, 1)
    hwg = jnp.zeros((1, FUSED), f32).at[0, MLP_H1:].set(nw[:GMF_OUT, 0])
    hwm = nw[GMF_OUT:, 0].reshape(1, MLP_OUT)
    hb = params["neumf_b"].astype(f32).reshape(1, 1)

    return (wf.astype(compute_dtype), bf, w2f.astype(compute_dtype), b2, hwg, hwm, hb)


def neumf_forward(params, user, movie, *, batch_tile=512, compute_dtype=jnp.float32):
    """NeuMF forward. user/movie: int32 (B,). Returns (B, 1) float32."""
    # Embedding gather (glue, plain JAX).
    # TODO(synk): in-kernel DMA gather of embedding rows is possible via scalar
    # prefetch, but per-row transfers are only 128 B so it is left in XLA.
    u_lat = jnp.take(params["user_emb"], user, axis=0).astype(jnp.float32)   # (B, E)
    m_lat = jnp.take(params["movie_emb"], movie, axis=0).astype(jnp.float32)  # (B, E)
    B, E = u_lat.shape

    # Tile selection: big tiles (multiple of 8), capped so the grid keeps >= 2
    # steps whenever the batch allows (v7x has 2 TensorCores).
    tile_cap = max(8, (int(batch_tile) // 8) * 8)
    half = _round_up(max(1, _round_up(B, 8) // 2), 8)
    tb = min(tile_cap, half)
    Bp = _round_up(B, tb)
    grid = (Bp // tb,)

    if Bp != B:
        pad = ((0, Bp - B), (0, 0))
        u_lat = jnp.pad(u_lat, pad)
        m_lat = jnp.pad(m_lat, pad)

    u_lat = u_lat.astype(compute_dtype)
    m_lat = m_lat.astype(compute_dtype)
    wf, bf, w2f, b2, hwg, hwm, hb = _prep_weights(params, compute_dtype)

    def whole(arr):
        # Whole-array block, same block at every grid step.
        return pl.BlockSpec(arr.shape, lambda i: (0, 0))

    out = pl.pallas_call(
        _neumf_kernel,
        out_shape=jax.ShapeDtypeStruct((Bp, 1), jnp.float32),
        grid_spec=pltpu.PrefetchScalarGridSpec(
            num_scalar_prefetch=0,
            grid=grid,
            in_specs=[
                pl.BlockSpec((tb, E), lambda i: (i, 0)),   # u_lat tile
                pl.BlockSpec((tb, E), lambda i: (i, 0)),   # m_lat tile
                whole(wf), whole(bf),
                whole(w2f), whole(b2),
                whole(hwg), whole(hwm), whole(hb),
            ],
            out_specs=pl.BlockSpec((tb, 1), lambda i: (i, 0)),
            scratch_shapes=[pltpu.VMEM((tb, XCAT), compute_dtype)],
        ),
        compiler_params=pltpu.CompilerParams(
            dimension_semantics=("parallel",)),
    )(u_lat, m_lat, wf, bf, w2f, b2, hwg, hwm, hb)
    return out[:B]


def init_params(key, num_users, num_items, embedding_dim=EMBEDDING_DIM):
    ks = jax.random.split(key, 10)

    def unif(k, shape, fan_in):
        bound = 1.0 / jnp.sqrt(fan_in)
        return jax.random.uniform(k, shape, jnp.float32, -bound, bound)

    return {
        "user_emb":  jax.random.normal(ks[0], (num_users, embedding_dim), jnp.float32),
        "movie_emb": jax.random.normal(ks[1], (num_items, embedding_dim), jnp.float32),
        "gmf_w":   unif(ks[2], (embedding_dim, GMF_OUT), embedding_dim),
        "gmf_b":   unif(ks[3], (GMF_OUT,), embedding_dim),
        "mlp_w1":  unif(ks[4], (embedding_dim * 2, MLP_H1), embedding_dim * 2),
        "mlp_b1":  unif(ks[5], (MLP_H1,), embedding_dim * 2),
        "mlp_w2":  unif(ks[6], (MLP_H1, MLP_OUT), MLP_H1),
        "mlp_b2":  unif(ks[7], (MLP_OUT,), MLP_H1),
        "neumf_w": unif(ks[8], (GMF_OUT + MLP_OUT, 1), GMF_OUT + MLP_OUT),
        "neumf_b": unif(ks[9], (1,), GMF_OUT + MLP_OUT),
    }


def _reference_forward(params, user, movie):
    """Pure-JAX reference matching the PyTorch module semantics."""
    u = jnp.take(params["user_emb"], user, axis=0)
    m = jnp.take(params["movie_emb"], movie, axis=0)
    gmf = jnp.maximum((u * m) @ params["gmf_w"] + params["gmf_b"], 0.0)
    mlp_in = jnp.concatenate([u, m], axis=1)
    h1 = jnp.maximum(mlp_in @ params["mlp_w1"] + params["mlp_b1"], 0.0)
    h2 = jnp.maximum(h1 @ params["mlp_w2"] + params["mlp_b2"], 0.0)
    neumf_in = jnp.concatenate([gmf, h2], axis=1)
    return neumf_in @ params["neumf_w"] + params["neumf_b"]


if __name__ == "__main__":
    num_users, num_items, num_ratings = 100, 200, 5

    key = jax.random.PRNGKey(0)
    pkey, ukey, mkey = jax.random.split(key, 3)
    params = init_params(pkey, num_users, num_items)

    # batch=8 (small, single tile) and batch=50 (non-multiple-of-8: exercises
    # the padding and the multi-tile / megacore grid path).
    for batch in (8, 50):
        user = jax.random.randint(ukey, (batch,), 0, num_users, dtype=jnp.int32)
        movie = jax.random.randint(mkey, (batch,), 0, num_items, dtype=jnp.int32)
        ref = _reference_forward(params, user, movie)

        # f32 path
        out = jax.block_until_ready(neumf_forward(params, user, movie))
        assert out.shape == (batch, 1)
        assert jnp.allclose(out, ref, atol=1e-4, rtol=1e-4), "f32 mismatch vs reference"

        # bf16 matmul path (f32 accumulation + f32 epilogue) - v6e/v7x config.
        out_bf16 = jax.block_until_ready(
            neumf_forward(params, user, movie, compute_dtype=jnp.bfloat16))
        assert out_bf16.shape == (batch, 1)
        assert jnp.allclose(out_bf16, ref, atol=2e-1, rtol=5e-2), "bf16 mismatch vs reference"

    print("KERNEL_OK")
</pallas_src>

<mosaic_0001>
module attributes {stable_mosaic.version = 11 : i64} {
  func.func @_neumf_kernel(%arg0: i32, %arg1: memref<8x32xf32, #tpu.memory_space<vmem>>, %arg2: memref<8x32xf32, #tpu.memory_space<vmem>>, %arg3: memref<96x96xf32, #tpu.memory_space<vmem>>, %arg4: memref<1x96xf32, #tpu.memory_space<vmem>>, %arg5: memref<96x32xf32, #tpu.memory_space<vmem>>, %arg6: memref<1x32xf32, #tpu.memory_space<vmem>>, %arg7: memref<1x96xf32, #tpu.memory_space<vmem>>, %arg8: memref<1x32xf32, #tpu.memory_space<vmem>>, %arg9: memref<1x1xf32, #tpu.memory_space<vmem>>, %arg10: memref<8x1xf32, #tpu.memory_space<vmem>>, %arg11: memref<8x96xf32, #tpu.memory_space<vmem>>) attributes {dimension_semantics = [#tpu.dimension_semantics<parallel>], iteration_bounds = array<i64: 1>, scalar_prefetch = 0 : i64, scratch_operands = 1 : i64, tpu.core_type = #tpu.core_type<tc>, window_params = [{transform_indices = @transform_0, window_bounds = array<i64: 8, 32>}, {transform_indices = @transform_1, window_bounds = array<i64: 8, 32>}, {pipeline_mode = #tpu.pipeline_mode<synchronous>, transform_indices = @transform_2, window_bounds = array<i64: 96, 96>}, {pipeline_mode = #tpu.pipeline_mode<synchronous>, transform_indices = @transform_3, window_bounds = array<i64: 1, 96>}, {pipeline_mode = #tpu.pipeline_mode<synchronous>, transform_indices = @transform_4, window_bounds = array<i64: 96, 32>}, {pipeline_mode = #tpu.pipeline_mode<synchronous>, transform_indices = @transform_5, window_bounds = array<i64: 1, 32>}, {pipeline_mode = #tpu.pipeline_mode<synchronous>, transform_indices = @transform_6, window_bounds = array<i64: 1, 96>}, {pipeline_mode = #tpu.pipeline_mode<synchronous>, transform_indices = @transform_7, window_bounds = array<i64: 1, 32>}, {pipeline_mode = #tpu.pipeline_mode<synchronous>, transform_indices = @transform_8, window_bounds = array<i64: 1, 1>}, {transform_indices = @transform_9, window_bounds = array<i64: 8, 1>}]} {
    %c0 = arith.constant 0 : index
    %c0_0 = arith.constant 0 : index
    %0 = vector.load %arg1[%c0, %c0_0] : memref<8x32xf32, #tpu.memory_space<vmem>>, vector<8x32xf32>
    %c0_1 = arith.constant 0 : index
    %c0_2 = arith.constant 0 : index
    %1 = vector.load %arg2[%c0_1, %c0_2] : memref<8x32xf32, #tpu.memory_space<vmem>>, vector<8x32xf32>
    %c0_3 = arith.constant 0 : index
    %c0_4 = arith.constant 0 : index
    %2 = vector.load %arg11[%c0_3, %c0_4] : memref<8x96xf32, #tpu.memory_space<vmem>>, vector<8x32xf32>
    tpu.vector_store %arg11[%c0_3, %c0_4], %0 {strides = array<i32>} : memref<8x96xf32, #tpu.memory_space<vmem>>, vector<8x32xf32>,
    %c0_5 = arith.constant 0 : index
    %c32 = arith.constant 32 : index
    %3 = vector.load %arg11[%c0_5, %c32] : memref<8x96xf32, #tpu.memory_space<vmem>>, vector<8x32xf32>
    tpu.vector_store %arg11[%c0_5, %c32], %1 {strides = array<i32>} : memref<8x96xf32, #tpu.memory_space<vmem>>, vector<8x32xf32>,
    %4 = arith.mulf %0, %1 : vector<8x32xf32>
    %c0_6 = arith.constant 0 : index
    %c64 = arith.constant 64 : index
    %5 = vector.load %arg11[%c0_6, %c64] : memref<8x96xf32, #tpu.memory_space<vmem>>, vector<8x32xf32>
    tpu.vector_store %arg11[%c0_6, %c64], %4 {strides = array<i32>} : memref<8x96xf32, #tpu.memory_space<vmem>>, vector<8x32xf32>,
    %c0_7 = arith.constant 0 : index
    %c0_8 = arith.constant 0 : index
    %6 = vector.load %arg11[%c0_7, %c0_8] : memref<8x96xf32, #tpu.memory_space<vmem>>, vector<8x96xf32>
    %c0_9 = arith.constant 0 : index
    %c0_10 = arith.constant 0 : index
    %7 = vector.load %arg3[%c0_9, %c0_10] : memref<96x96xf32, #tpu.memory_space<vmem>>, vector<96x96xf32>
    %cst = arith.constant dense<0.000000e+00> : vector<8x96xf32>
    %8 = tpu.matmul %6, %7, %cst {dimension_numbers = #tpu.dot_dimension_numbers<[1], [0], [0], [1], [0, 0, 1, 1], [], []>} : vector<8x96xf32>, vector<96x96xf32>, vector<8x96xf32> -> vector<8x96xf32>
    %c0_11 = arith.constant 0 : index
    %c0_12 = arith.constant 0 : index
    %9 = vector.load %arg4[%c0_11, %c0_12] : memref<1x96xf32, #tpu.memory_space<vmem>>, vector<1x96xf32>
    %10 = vector.broadcast %9 : vector<1x96xf32> to vector<8x96xf32>
    %11 = arith.addf %8, %10 : vector<8x96xf32>
    %cst_13 = arith.constant 0.000000e+00 : f32
    %12 = vector.broadcast %cst_13 : f32 to vector<8x96xf32>
    %13 = arith.maximumf %11, %12 : vector<8x96xf32>
    %c0_14 = arith.constant 0 : index
    %c0_15 = arith.constant 0 : index
    %14 = vector.load %arg5[%c0_14, %c0_15] : memref<96x32xf32, #tpu.memory_space<vmem>>, vector<96x32xf32>
    %cst_16 = arith.constant dense<0.000000e+00> : vector<8x32xf32>
    %15 = tpu.matmul %13, %14, %cst_16 {dimension_numbers = #tpu.dot_dimension_numbers<[1], [0], [0], [1], [0, 0, 1, 1], [], []>} : vector<8x96xf32>, vector<96x32xf32>, vector<8x32xf32> -> vector<8x32xf32>
    %c0_17 = arith.constant 0 : index
    %c0_18 = arith.constant 0 : index
    %16 = vector.load %arg6[%c0_17, %c0_18] : memref<1x32xf32, #tpu.memory_space<vmem>>, vector<1x32xf32>
    %17 = vector.broadcast %16 : vector<1x32xf32> to vector<8x32xf32>
    %18 = arith.addf %15, %17 : vector<8x32xf32>
    %cst_19 = arith.constant 0.000000e+00 : f32
    %19 = vector.broadcast %cst_19 : f32 to vector<8x32xf32>
    %20 = arith.maximumf %18, %19 : vector<8x32xf32>
    %c0_20 = arith.constant 0 : index
    %c0_21 = arith.constant 0 : index
    %21 = vector.load %arg7[%c0_20, %c0_21] : memref<1x96xf32, #tpu.memory_space<vmem>>, vector<1x96xf32>
    %22 = vector.broadcast %21 : vector<1x96xf32> to vector<8x96xf32>
    %23 = arith.mulf %13, %22 : vector<8x96xf32>
    %cst_22 = arith.constant dense<0.000000e+00> : vector<8xf32>
    %24 = vector.multi_reduction <add>, %23, %cst_22 [1] : vector<8x96xf32> to vector<8xf32>
    %25 = vector.shape_cast %24 : vector<8xf32> to vector<8x1xf32>
    %c0_23 = arith.constant 0 : index
    %c0_24 = arith.constant 0 : index
    %26 = vector.load %arg8[%c0_23, %c0_24] : memref<1x32xf32, #tpu.memory_space<vmem>>, vector<1x32xf32>
    %27 = vector.broadcast %26 : vector<1x32xf32> to vector<8x32xf32>
    %28 = arith.mulf %20, %27 : vector<8x32xf32>
    %cst_25 = arith.constant dense<0.000000e+00> : vector<8xf32>
    %29 = vector.multi_reduction <add>, %28, %cst_25 [1] : vector<8x32xf32> to vector<8xf32>
    %30 = vector.shape_cast %29 : vector<8xf32> to vector<8x1xf32>
    %31 = arith.addf %25, %30 : vector<8x1xf32>
    %c0_26 = arith.constant 0 : index
    %c0_27 = arith.constant 0 : index
    %32 = vector.load %arg9[%c0_26, %c0_27] : memref<1x1xf32, #tpu.memory_space<vmem>>, vector<1x1xf32>
    %33 = vector.broadcast %32 : vector<1x1xf32> to vector<8x1xf32>
    %34 = arith.addf %31, %33 : vector<8x1xf32>
    %c0_28 = arith.constant 0 : index
    %c0_29 = arith.constant 0 : index
    %35 = vector.load %arg10[%c0_28, %c0_29] : memref<8x1xf32, #tpu.memory_space<vmem>>, vector<8x1xf32>
    tpu.vector_store %arg10[%c0_28, %c0_29], %34 {strides = array<i32>} : memref<8x1xf32, #tpu.memory_space<vmem>>, vector<8x1xf32>,
    return
  }
  func.func @transform_0(%arg0: i32) -> (i32, i32) {
    %c0_i32 = arith.constant 0 : i32
    %c0_i32_0 = arith.constant 0 : i32
    return %arg0, %c0_i32 : i32, i32
  }
  func.func @transform_1(%arg0: i32) -> (i32, i32) {
    %c0_i32 = arith.constant 0 : i32
    %c0_i32_0 = arith.constant 0 : i32
    return %arg0, %c0_i32 : i32, i32
  }
  func.func @transform_2(%arg0: i32) -> (i32, i32) {
    %c0_i32 = arith.constant 0 : i32
    %c0_i32_0 = arith.constant 0 : i32
    %c0_i32_1 = arith.constant 0 : i32
    return %c0_i32, %c0_i32_0 : i32, i32
  }
  func.func @transform_3(%arg0: i32) -> (i32, i32) {
    %c0_i32 = arith.constant 0 : i32
    %c0_i32_0 = arith.constant 0 : i32
    %c0_i32_1 = arith.constant 0 : i32
    return %c0_i32, %c0_i32_0 : i32, i32
  }
  func.func @transform_4(%arg0: i32) -> (i32, i32) {
    %c0_i32 = arith.constant 0 : i32
    %c0_i32_0 = arith.constant 0 : i32
    %c0_i32_1 = arith.constant 0 : i32
    return %c0_i32, %c0_i32_0 : i32, i32
  }
  func.func @transform_5(%arg0: i32) -> (i32, i32) {
    %c0_i32 = arith.constant 0 : i32
    %c0_i32_0 = arith.constant 0 : i32
    %c0_i32_1 = arith.constant 0 : i32
    return %c0_i32, %c0_i32_0 : i32, i32
  }
  func.func @transform_6(%arg0: i32) -> (i32, i32) {
    %c0_i32 = arith.constant 0 : i32
    %c0_i32_0 = arith.constant 0 : i32
    %c0_i32_1 = arith.constant 0 : i32
    return %c0_i32, %c0_i32_0 : i32, i32
  }
  func.func @transform_7(%arg0: i32) -> (i32, i32) {
    %c0_i32 = arith.constant 0 : i32
    %c0_i32_0 = arith.constant 0 : i32
    %c0_i32_1 = arith.constant 0 : i32
    return %c0_i32, %c0_i32_0 : i32, i32
  }
  func.func @transform_8(%arg0: i32) -> (i32, i32) {
    %c0_i32 = arith.constant 0 : i32
    %c0_i32_0 = arith.constant 0 : i32
    %c0_i32_1 = arith.constant 0 : i32
    return %c0_i32, %c0_i32_0 : i32, i32
  }
  func.func @transform_9(%arg0: i32) -> (i32, i32) {
    %c0_i32 = arith.constant 0 : i32
    %c0_i32_0 = arith.constant 0 : i32
    return %arg0, %c0_i32 : i32, i32
  }
}

</mosaic_0001>

<llo_original>
// kernel: tpu_custom_call.1
$region0: #{tpu_custom_call.1}
  #allocation0 [shape = 'u32[]', space=smem, size = 0x4, offset = 0x4, fixed_abs, tag = 'smem constant byte address 0x4 - core index']
  #allocation1 [shape = 'u32[144,128]{1,0:T(1,128)}', space=vmem, size = 0x12000, scoped, tag = 'internal scratch']
  #allocation2 [shape = 'f32[8,96]{1,0:T(8,128)}', space=vmem, size = 0x1000, scoped, tag = 'scratch operand']
  #allocation3 [shape = 'f32[1,1]{1,0:T(1,128)S(1)}', space=vmem, size = 0x200, scoped, tag = 'scoped memory for tpu_custom_call.1']
  %s0 = inlined_call_operand.vmem [shape: f32[8,32], index: 0, kind: input, shape index: {}]
  %s1 = inlined_call_operand.vmem [shape: f32[8,32], index: 1, kind: input, shape index: {}]
  %s2 = inlined_call_operand.vmem [shape: f32[96,96], index: 2, kind: input, shape index: {}]
  %s3 = inlined_call_operand.vmem [shape: f32[1,96], index: 3, kind: input, shape index: {}]
  %s4 = inlined_call_operand.vmem [shape: f32[96,32], index: 4, kind: input, shape index: {}]
  %s5 = inlined_call_operand.vmem [shape: f32[1,32], index: 5, kind: input, shape index: {}]
  %s6 = inlined_call_operand.vmem [shape: f32[1,96], index: 6, kind: input, shape index: {}]
  %s7 = inlined_call_operand.vmem [shape: f32[1,32], index: 7, kind: input, shape index: {}]
  %s8 = inlined_call_operand.<no memory space> [shape: f32[1,1], index: 8, kind: input, shape index: {}]
  %s9 = inlined_call_operand.vmem [shape: f32[8,1], index: 9, kind: output, shape index: {}]
  %s10 = sld [smem:[#allocation0]]
  $region46: #{tpu_custom_call.1} parent=0
    _
  %s12 = ssub.s32 1, %s10
  %s13 = scalar_select 0, %s12, %s10
  %v14 = vstv %s8
  %15 = vst [vmem:[#allocation3] sm:$0x1] %v14
  // Predicated region
  $region2: #{tpu_custom_call.1} parent=0 // pred_check
    _
  $region3: #{tpu_custom_call.1} parent=0 // pred_check_branch
    %17 = sbr.rel (0) target = $region5
  $region4: #{tpu_custom_call.1} parent=0 // pred_region
    _
  $region5: #{tpu_custom_call.1} parent=0 // pred_fallthru
    _
  // Predicated region
  $region6: #{tpu_custom_call.1} parent=0 // pred_check
    _
  $region7: #{tpu_custom_call.1} parent=0 // pred_check_branch
    %19 = sbr.rel (0) target = $region9
  $region8: #{tpu_custom_call.1} parent=0 // pred_region
    _
  $region9: #{tpu_custom_call.1} parent=0 // pred_fallthru
    _
  // Predicated region
  $region10: #{tpu_custom_call.1} parent=0 // pred_check
    _
  $region11: #{tpu_custom_call.1} parent=0 // pred_check_branch
    %21 = sbr.rel (0) target = $region13
  $region12: #{tpu_custom_call.1} parent=0 // pred_region
    _
  $region13: #{tpu_custom_call.1} parent=0 // pred_fallthru
    _
  // Predicated region
  $region14: #{tpu_custom_call.1} parent=0 // pred_check
    _
  $region15: #{tpu_custom_call.1} parent=0 // pred_check_branch
    %23 = sbr.rel (0) target = $region17
  $region16: #{tpu_custom_call.1} parent=0 // pred_region
    _
  $region17: #{tpu_custom_call.1} parent=0 // pred_fallthru
    _
  // Predicated region
  $region18: #{tpu_custom_call.1} parent=0 // pred_check
    _
  $region19: #{tpu_custom_call.1} parent=0 // pred_check_branch
    %25 = sbr.rel (0) target = $region21
  $region20: #{tpu_custom_call.1} parent=0 // pred_region
    _
  $region21: #{tpu_custom_call.1} parent=0 // pred_fallthru
    _
  // Predicated region
  $region22: #{tpu_custom_call.1} parent=0 // pred_check
    _
  $region23: #{tpu_custom_call.1} parent=0 // pred_check_branch
    %27 = sbr.rel (0) target = $region25
  $region24: #{tpu_custom_call.1} parent=0 // pred_region
    _
  $region25: #{tpu_custom_call.1} parent=0 // pred_fallthru
    _
  // Predicated region
  $region26: #{tpu_custom_call.1} parent=0 // pred_check
    _
  $region27: #{tpu_custom_call.1} parent=0 // pred_check_branch
    %29 = sbr.rel (0) target = $region29
  $region28: #{tpu_custom_call.1} parent=0 // pred_region
    _
  $region29: #{tpu_custom_call.1} parent=0 // pred_fallthru
    _
  // Predicated region
  $region30: #{tpu_custom_call.1} parent=0 // pred_check
    _
  $region31: #{tpu_custom_call.1} parent=0 // pred_check_branch
    %31 = sbr.rel (0) target = $region33
  $region32: #{tpu_custom_call.1} parent=0 // pred_region
    _
  $region33: #{tpu_custom_call.1} parent=0 // pred_fallthru
    _
  // Predicated region
  $region34: #{tpu_custom_call.1} parent=0 // pred_check
    _
  $region35: #{tpu_custom_call.1} parent=0 // pred_check_branch
    %33 = sbr.rel (0) target = $region37
  $region36: #{tpu_custom_call.1} parent=0 // pred_region
    _
  $region37: #{tpu_custom_call.1} parent=0 // pred_fallthru
    _
  %v34 = vld [vmem:[%s0] sm:$0xff]
  %v35 = vld [vmem:[%s1] sm:$0xff]
  %vm36 = vcmask 261120
  %37 = vst.msk [vmem:[#allocation2] sm:$0xff] %vm36, %v34
  %39 = vrot.lane.b32.xlu0 %v35, 32
  %v40 = vpop.permute.xlu0 %39
  %vm42 = vcmask 523520
  %43 = vst.msk [vmem:[#allocation2] sm:$0xff] %vm42, %v40
  %v44 = vmul.f32 %v34, %v35
  %46 = vrot.lane.b32.xlu0 %v44, 64
  %v47 = vpop.permute.xlu0 %46
  %vm49 = vcmask 785920
  %50 = vst.msk [vmem:[#allocation2] sm:$0xff] %vm49, %v47
  %v51 = vld [vmem:[#allocation2] sm:$0xff]
  %v52 = vld [vmem:[%s2] sm:$0xff]
  %v53 = vld [vmem:[%s2 + $0x8] sm:$0xff]
  %v54 = vld [vmem:[%s2 + $0x10] sm:$0xff]
  %v55 = vld [vmem:[%s2 + $0x18] sm:$0xff]
  %v56 = vld [vmem:[%s2 + $0x20] sm:$0xff]
  %v57 = vld [vmem:[%s2 + $0x28] sm:$0xff]
  %v58 = vld [vmem:[%s2 + $0x30] sm:$0xff]
  %v59 = vld [vmem:[%s2 + $0x38] sm:$0xff]
  %v60 = vld [vmem:[%s2 + $0x40] sm:$0xff]
  %v61 = vld [vmem:[%s2 + $0x48] sm:$0xff]
  %v62 = vld [vmem:[%s2 + $0x50] sm:$0xff]
  %v63 = vld [vmem:[%s2 + $0x58] sm:$0xff]
  %v64 = vld [vmem:[%s3] sm:$0x1]
  %v66 = vlaneseq
  %v67 = vshrl.u32 %v66, 7
  %v68 = vsub.s32 0, %v67
  %v69 = vrot.slane %v64, %v68
  %vm71 = vcmask 785408
  %v73 = vsel %vm71, %v51, 0
  %75 = vmatprep.subr.mxu0 0.0
  %76 = vmatpush1.msra.mxu0 %v52
  %77 = vmatprep.subr.mxu0 0.0
  %78 = vmatpush1.msra.mxu0 %v53
  %79 = vmatprep.subr.mxu0 0.0
  %80 = vmatpush1.msra.mxu0 %v54
  %81 = vmatprep.subr.mxu0 0.0
  %82 = vmatpush1.msra.mxu0 %v55
  %83 = vmatprep.subr.mxu0 0.0
  %84 = vmatpush1.msra.mxu0 %v56
  %85 = vmatprep.subr.mxu0 0.0
  %86 = vmatpush1.msra.mxu0 %v57
  %87 = vmatprep.subr.mxu0 0.0
  %88 = vmatpush1.msra.mxu0 %v58
  %89 = vmatprep.subr.mxu0 0.0
  %90 = vmatpush1.msra.mxu0 %v59
  %91 = vmatprep.subr.mxu0 0.0
  %92 = vmatpush1.msra.mxu0 %v60
  %93 = vmatprep.subr.mxu0 0.0
  %94 = vmatpush1.msra.mxu0 %v61
  %95 = vmatprep.subr.mxu0 0.0
  %96 = vmatpush1.msra.mxu0 %v62
  %97 = vmatprep.subr.mxu0 0.0
  %98 = vmatpush1.msra.mxu0 %v63
  %99 = vmatprep.subr.mxu0 0.0
  %100 = vmatpush1.msra.mxu0 0.0
  %101 = vmatprep.subr.mxu0 0.0
  %102 = vmatpush1.msra.mxu0 0.0
  %103 = vmatprep.subr.mxu0 0.0
  %104 = vmatpush1.msra.mxu0 0.0
  %105 = vmatprep.subr.mxu0 0.0
  %106 = vmatpush1.msra.mxu0 0.0
  %107 = vmatprep.subr.mxu0 0.0
  %108 = vmatpush1.msra.mxu0 0.0
  %109 = vmatprep.subr.mxu0 0.0
  %110 = vmatpush1.msra.mxu0 0.0
  %111 = vmatprep.subr.mxu0 0.0
  %112 = vmatpush1.msra.mxu0 0.0
  %113 = vmatprep.subr.mxu0 0.0
  %114 = vmatpush1.msra.mxu0 0.0
  %115 = vmatprep.subr.mxu0 0.0
  %116 = vmatpush1.msra.mxu0 0.0
  %117 = vmatprep.subr.mxu0 0.0
  %118 = vmatpush1.msra.mxu0 0.0
  %119 = vmatprep.subr.mxu0 0.0
  %120 = vmatpush1.msra.mxu0 0.0
  %121 = vmatprep.subr.mxu0 0.0
  %122 = vmatpush1.msra.mxu0 0.0
  %123 = vmatprep.subr.mxu0 0.0
  %124 = vmatpush1.msra.mxu0 0.0
  %125 = vmatprep.subr.mxu0 0.0
  %126 = vmatpush1.msra.mxu0 0.0
  %127 = vmatprep.subr.mxu0 0.0
  %128 = vmatpush1.msra.mxu0 0.0
  %129 = vmatprep.subr.mxu0 0.0
  %130 = vmatpush1.msra.mxu0 0.0
  %131 = vmatprep.subr.mxu0 0.0
  %132 = vmatpush1.msra.mxu0 0.0
  %133 = vmatprep.subr.mxu0 0.0
  %134 = vmatpush1.msra.mxu0 0.0
  %135 = vmatprep.subr.mxu0 0.0
  %136 = vmatpush1.msra.mxu0 0.0
  %137 = vmatprep.subr.mxu0 0.0
  %138 = vmatpush1.msra.mxu0 0.0
  %139 = vmatprep.mubr.f32.mxu0 0.0
  %140 = vmatmul.mubr.f32.gmra.mrb[0].mxu0 %v73
  %v141 = vpop.f32.mrb[0].mxu0
  %v142 = vadd.f32 %v69, %v141
  %v143 = vpop.f32.mrb[0].mxu0
  %144 = vdwg.mxu0
  %v145 = vmax.f32 %v142, 0.0
  %v146 = vld [vmem:[%s4] sm:$0xff]
  %v147 = vld [vmem:[%s4 + $0x8] sm:$0xff]
  %v148 = vld [vmem:[%s4 + $0x10] sm:$0xff]
  %v149 = vld [vmem:[%s4 + $0x18] sm:$0xff]
  %v150 = vld [vmem:[%s4 + $0x20] sm:$0xff]
  %v151 = vld [vmem:[%s4 + $0x28] sm:$0xff]
  %v152 = vld [vmem:[%s4 + $0x30] sm:$0xff]
  %v153 = vld [vmem:[%s4 + $0x38] sm:$0xff]
  %v154 = vld [vmem:[%s4 + $0x40] sm:$0xff]
  %v155 = vld [vmem:[%s4 + $0x48] sm:$0xff]
  %v156 = vld [vmem:[%s4 + $0x50] sm:$0xff]
  %v157 = vld [vmem:[%s4 + $0x58] sm:$0xff]
  %v158 = vld [vmem:[%s5] sm:$0x1]
  %v160 = vlaneseq
  %v161 = vshrl.u32 %v160, 7
  %v162 = vsub.s32 0, %v161
  %v163 = vrot.slane %v158, %v162
  %v166 = vsel %vm71, %v145, 0
  %168 = vmatprep.subr.mxu0 0.0
  %169 = vmatpush1.msra.mxu0 %v146
  %170 = vmatprep.subr.mxu0 0.0
  %171 = vmatpush1.msra.mxu0 %v147
  %172 = vmatprep.subr.mxu0 0.0
  %173 = vmatpush1.msra.mxu0 %v148
  %174 = vmatprep.subr.mxu0 0.0
  %175 = vmatpush1.msra.mxu0 %v149
  %176 = vmatprep.subr.mxu0 0.0
  %177 = vmatpush1.msra.mxu0 %v150
  %178 = vmatprep.subr.mxu0 0.0
  %179 = vmatpush1.msra.mxu0 %v151
  %180 = vmatprep.subr.mxu0 0.0
  %181 = vmatpush1.msra.mxu0 %v152
  %182 = vmatprep.subr.mxu0 0.0
  %183 = vmatpush1.msra.mxu0 %v153
  %184 = vmatprep.subr.mxu0 0.0
  %185 = vmatpush1.msra.mxu0 %v154
  %186 = vmatprep.subr.mxu0 0.0
  %187 = vmatpush1.msra.mxu0 %v155
  %188 = vmatprep.subr.mxu0 0.0
  %189 = vmatpush1.msra.mxu0 %v156
  %190 = vmatprep.subr.mxu0 0.0
  %191 = vmatpush1.msra.mxu0 %v157
  %192 = vmatprep.subr.mxu0 0.0
  %193 = vmatpush1.msra.mxu0 0.0
  %194 = vmatprep.subr.mxu0 0.0
  %195 = vmatpush1.msra.mxu0 0.0
  %196 = vmatprep.subr.mxu0 0.0
  %197 = vmatpush1.msra.mxu0 0.0
  %198 = vmatprep.subr.mxu0 0.0
  %199 = vmatpush1.msra.mxu0 0.0
  %200 = vmatprep.subr.mxu0 0.0
  %201 = vmatpush1.msra.mxu0 0.0
  %202 = vmatprep.subr.mxu0 0.0
  %203 = vmatpush1.msra.mxu0 0.0
  %204 = vmatprep.subr.mxu0 0.0
  %205 = vmatpush1.msra.mxu0 0.0
  %206 = vmatprep.subr.mxu0 0.0
  %207 = vmatpush1.msra.mxu0 0.0
  %208 = vmatprep.subr.mxu0 0.0
  %209 = vmatpush1.msra.mxu0 0.0
  %210 = vmatprep.subr.mxu0 0.0
  %211 = vmatpush1.msra.mxu0 0.0
  %212 = vmatprep.subr.mxu0 0.0
  %213 = vmatpush1.msra.mxu0 0.0
  %214 = vmatprep.subr.mxu0 0.0
  %215 = vmatpush1.msra.mxu0 0.0
  %216 = vmatprep.subr.mxu0 0.0
  %217 = vmatpush1.msra.mxu0 0.0
  %218 = vmatprep.subr.mxu0 0.0
  %219 = vmatpush1.msra.mxu0 0.0
  %220 = vmatprep.subr.mxu0 0.0
  %221 = vmatpush1.msra.mxu0 0.0
  %222 = vmatprep.subr.mxu0 0.0
  %223 = vmatpush1.msra.mxu0 0.0
  %224 = vmatprep.subr.mxu0 0.0
  %225 = vmatpush1.msra.mxu0 0.0
  %226 = vmatprep.subr.mxu0 0.0
  %227 = vmatpush1.msra.mxu0 0.0
  %228 = vmatprep.subr.mxu0 0.0
  %229 = vmatpush1.msra.mxu0 0.0
  %230 = vmatprep.subr.mxu0 0.0
  %231 = vmatpush1.msra.mxu0 0.0
  %232 = vmatprep.mubr.f32.mxu0 0.0
  %233 = vmatmul.mubr.f32.gmra.mrb[0].mxu0 %v166
  %v234 = vpop.f32.mrb[0].mxu0
  %v235 = vadd.f32 %v163, %v234
  %v236 = vpop.f32.mrb[0].mxu0
  %237 = vdwg.mxu0
  %v238 = vmax.f32 %v235, 0.0
  %v239 = vld [vmem:[%s6] sm:$0x1]
  %v241 = vlaneseq
  %v242 = vshrl.u32 %v241, 7
  %v243 = vsub.s32 0, %v242
  %v244 = vrot.slane %v239, %v243
  %v246 = vmul.f32 %v145, %v244
  %v247 = vsel %vm71, %v246, 0.0
  %248 = vadd.xlane.f32.xlu0 %v247
  %v249 = vpop.xlane.xlu0 %248
  %v250 = vld [vmem:[%s7] sm:$0x1]
  %v252 = vlaneseq
  %v253 = vshrl.u32 %v252, 7
  %v254 = vsub.s32 0, %v253
  %v255 = vrot.slane %v250, %v254
  %v257 = vmul.f32 %v238, %v255
  %v258 = vsel %vm36, %v257, 0.0
  %259 = vadd.xlane.f32.xlu0 %v258
  %v260 = vpop.xlane.xlu0 %259
  %v261 = vadd.f32 %v249, %v260
  %v262 = vld [vmem:[#allocation3] sm:$0x1]
  %v264 = vlaneseq
  %v265 = vshrl.u32 %v264, 7
  %v266 = vsub.s32 0, %v265
  %v267 = vrot.slane %v262, %v266
  %v269 = vadd.f32 %v261, %v267
  %vm270 = vcmask 7168
  %271 = vst.msk [vmem:[%s9] sm:$0xff] %vm270, %v269
  // Predicated region
  $region38: #{tpu_custom_call.1} parent=0 // pred_check
    _
  $region39: #{tpu_custom_call.1} parent=0 // pred_check_branch
    %273 = sbr.rel (0) target = $region41
  $region40: #{tpu_custom_call.1} parent=0 // pred_region
    _
  $region41: #{tpu_custom_call.1} parent=0 // pred_fallthru
    _
  // Predicated region
  $region42: #{tpu_custom_call.1} parent=0 // pred_check
    _
  $region43: #{tpu_custom_call.1} parent=0 // pred_check_branch
    %275 = sbr.rel (0) target = $region45
  $region44: #{tpu_custom_call.1} parent=0 // pred_region
    _
  $region45: #{tpu_custom_call.1} parent=0 // pred_fallthru
    _

</llo_original>
